<compile_context>
chip_gen: v5e
topology: v5e:2x2
jax: 0.10.0
libtpu: 0.0.40
codegen_flags: <defaults>
</compile_context>

<pallas_src>
import functools

import jax
import jax.numpy as jnp
import numpy as np
from jax.experimental import pallas as pl
from jax.experimental.pallas import tpu as pltpu


def _gat_attn_kernel(adj_ref, f1_ref, f2t_ref, hext_ref, o_ref, *,
                     n_heads, c_out_h, inv_temp, low_precision_dtype):
    """Row-tiled sparse-softmax attention + aggregation, all heads fused.

    Blocks:
      adj_ref : (TQ, N)             query-row tile of the adjacency matrix
      f1_ref  : (TQ, H)             query-side attention scalars  (h_q @ v0_h)
      f2t_ref : (H, N)              key-side attention scalars, pre-transposed
      hext_ref: (N, H*(c_out_h+1))  per-head [h_keys | 1] blocks (ones column
                                    folds the softmax denominator into the matmul)
      o_ref   : (TQ, H*c_out_h)
    """
    cb = c_out_h + 1
    adj = adj_ref[...].astype(jnp.float32)        # (TQ, N)
    f1 = f1_ref[...]                              # (TQ, H)
    f2t = f2t_ref[...]                            # (H, N)

    for h in range(n_heads):                      # static, small head count
        # attn_logits = adj * (f1 + f2.T); the f2.T row is already materialized.
        logits = adj * (f1[:, h:h + 1] + f2t[h:h + 1, :])          # (TQ, N)
        # torch keeps only the *nonzero* entries of sigmoid(L)-0.5 in the sparse
        # softmax; structurally-zero (and exactly-cancelling) entries stay zero.
        mask = logits != 0.0
        if low_precision_dtype is not None:
            logits = logits.astype(low_precision_dtype)
        # sigmoid(L) - 0.5 == 0.5 * tanh(L / 2)  (single EUP op, accurate near 0)
        z = jnp.tanh(logits * 0.5) * (0.5 * inv_temp)
        # |z| <= 0.5/temp (< 80, checked statically in the wrapper) so exp cannot
        # overflow; by softmax shift-invariance no running max is needed.
        e = jnp.where(mask, jnp.exp(z), jnp.zeros_like(z))         # (TQ, N)

        h_ext = hext_ref[:, h * cb:(h + 1) * cb]                   # (N, c_out_h+1)
        if low_precision_dtype is not None:
            h_ext = h_ext.astype(low_precision_dtype)
        acc_ext = jnp.dot(e, h_ext, preferred_element_type=jnp.float32)
        acc = acc_ext[:, :c_out_h]                # e @ h_keys          (TQ, c_out_h)
        s = acc_ext[:, c_out_h:]                  # sum(e) via ones col (TQ, 1)
        has_nbr = s > 0.0
        out = jnp.where(has_nbr, acc / jnp.where(has_nbr, s, 1.0), 0.0)
        o_ref[:, h * c_out_h:(h + 1) * c_out_h] = out.astype(o_ref.dtype)


def _vmem_limit_bytes(tq, n, n_heads, cb, hc):
    """Working-set-derived scoped-VMEM limit (generous, floored at 16 MiB)."""
    try:
        info = pltpu.get_tpu_info()
        cap = getattr(info, "vmem_capacity_bytes", None)
        if cap is None:
            return None
        cap = int(cap)
    except Exception:
        return None
    f32 = 4
    pipelined = 2 * f32 * (tq * n + tq * n_heads + tq * hc)    # double-buffered tiles
    resident = 2 * f32 * (n_heads * n + n * n_heads * cb)      # full blocks (x2 safety)
    temps = 8 * f32 * tq * n                                   # live (TQ, N) temporaries
    need = pipelined + resident + temps + (4 << 20)
    return int(max(16 << 20, min(need, (cap * 3) // 4)))


def gat_multi_head(node_feats, adj_matrix, params, *, temp=1.0, concat_heads=True,
                   tq=None, low_precision_dtype=None, interpret=False):
    """params: dict with W (H, c_in, c_out_h), b/v0/v1 (H, c_out_h).

    low_precision_dtype: e.g. jnp.bfloat16 to run the N^2 elementwise /
    transcendental region and the aggregation matmul inputs in bf16 on v6e/v7x
    (f32 accumulation).  Default None keeps full f32 fidelity.
    """
    W, b, v0, v1 = params["W"], params["b"], params["v0"], params["v1"]
    n_heads, c_in, c_out_h = W.shape
    N = node_feats.shape[0]
    HC = n_heads * c_out_h
    cb = c_out_h + 1

    # Without a running-max subtraction, exp((sigmoid-0.5)/temp) must stay finite.
    assert 0.5 / float(temp) < 80.0, "temp too small for the max-free softmax path"

    x = node_feats.astype(jnp.float32)
    # Keep adj in its incoming floating dtype (e.g. bf16 {0,1} mask) to shrink the
    # dominant HBM transfer; upcast to f32 inside the kernel.
    adj = adj_matrix if jnp.issubdtype(adj_matrix.dtype, jnp.floating) \
        else adj_matrix.astype(jnp.float32)

    hp = jax.lax.Precision.HIGHEST
    # nn.Linear for every head (cheap O(N*c_in*HC); left to XLA by design).
    h = jnp.einsum("nc,hcd->nhd", x, W, precision=hp) + b[None, :, :]   # (N, H, C)
    # Ones column per head folds the softmax denominator into the MXU matmul.
    ones_col = jnp.ones((N, n_heads, 1), jnp.float32)
    h_ext = jnp.concatenate([h, ones_col], axis=-1).reshape(N, n_heads * cb)
    # Rank-1 attention projections: query side, and key side pre-transposed ONCE.
    f1 = jnp.einsum("nhd,hd->nh", h, v0, precision=hp)                  # (N, H)
    f2t = jnp.einsum("nhd,hd->hn", h, v1, precision=hp)                 # (H, N)

    # Row-tile size: sublane-aligned, sized so each (TQ, N) f32 adj tile is ~2 MiB
    # (keeps the live N^2 temporaries small enough for v7x's 64 MiB VMEM too).
    if tq is None:
        tq = (2 * 1024 * 1024) // (4 * max(N, 1))
        tq = max(8, min(512, (tq // 8) * 8))
    if tq >= N:
        tq = N                                   # single full-dim row tile
    else:
        tq = max(8, (tq // 8) * 8)
    grid = (pl.cdiv(N, tq),)

    in_specs = [
        pl.BlockSpec((tq, N), lambda i: (i, 0)),                     # adj row tile
        pl.BlockSpec((tq, n_heads), lambda i: (i, 0)),               # f1 row tile
        pl.BlockSpec((n_heads, N), lambda i: (0, 0)),                # f2t (resident)
        pl.BlockSpec((N, n_heads * cb), lambda i: (0, 0)),           # h_ext (resident)
    ]
    out_specs = pl.BlockSpec((tq, HC), lambda i: (i, 0))

    # Advisory cost estimate for XLA's scheduler.
    flops = n_heads * (2 * N * N * cb + 8 * N * N)
    transcendentals = 2 * n_heads * N * N                            # tanh + exp
    bytes_accessed = 4 * (N * N + 2 * N * n_heads + N * n_heads * cb + N * HC)
    cost = pl.CostEstimate(flops=int(flops), transcendentals=int(transcendentals),
                           bytes_accessed=int(bytes_accessed))

    cp_kwargs = dict(dimension_semantics=("parallel",))              # v7x megacore
    limit = _vmem_limit_bytes(tq, N, n_heads, cb, HC)
    if limit is not None:
        cp_kwargs["vmem_limit_bytes"] = limit

    kernel = functools.partial(_gat_attn_kernel, n_heads=n_heads, c_out_h=c_out_h,
                               inv_temp=float(1.0 / temp),
                               low_precision_dtype=low_precision_dtype)

    out = pl.pallas_call(
        kernel,
        grid=grid,
        in_specs=in_specs,
        out_specs=out_specs,
        out_shape=jax.ShapeDtypeStruct((N, HC), jnp.float32),
        compiler_params=pltpu.CompilerParams(**cp_kwargs),
        cost_estimate=cost,
        interpret=interpret,
    )(adj, f1, f2t, h_ext)

    if concat_heads:
        # torch.cat(res, dim=1) -- the kernel already lays heads out this way.
        return out
    # torch.mean(torch.stack(res, dim=0), dim=0)
    return out.reshape(N, n_heads, c_out_h).mean(axis=1)


def init_params(key, c_in, c_out, n_heads, concat_heads=True):
    if concat_heads:
        assert c_out % n_heads == 0
        c_out_h = c_out // n_heads
    else:
        c_out_h = c_out
    k_w, k_v0, k_v1 = jax.random.split(key, 3)
    lim_w = np.sqrt(6.0 / (c_in + c_out_h))
    lim_v = np.sqrt(6.0 / (c_out_h + 1))
    W = jax.random.uniform(k_w, (n_heads, c_in, c_out_h), jnp.float32, -lim_w, lim_w)
    b = jnp.zeros((n_heads, c_out_h), jnp.float32)
    v0 = jax.random.uniform(k_v0, (n_heads, c_out_h), jnp.float32, -lim_v, lim_v)
    v1 = jax.random.uniform(k_v1, (n_heads, c_out_h), jnp.float32, -lim_v, lim_v)
    return {"W": W, "b": b, "v0": v0, "v1": v1}


def _reference(node_feats, adj_matrix, params, temp=1.0, concat_heads=True):
    """Pure-JAX mirror of the torch module (sigmoid + max-subtracted sparse softmax)."""
    hp = jax.lax.Precision.HIGHEST
    outs = []
    for h in range(params["W"].shape[0]):
        W, b = params["W"][h], params["b"][h]
        v0, v1 = params["v0"][h], params["v1"][h]
        hfeat = jnp.dot(node_feats, W, precision=hp) + b
        f1 = jnp.dot(hfeat, v0[:, None], precision=hp)
        f2 = jnp.dot(hfeat, v1[:, None], precision=hp)
        logits = adj_matrix * (f1 + f2.T)
        u = jax.nn.sigmoid(logits) - 0.5
        mask = u != 0.0
        z = jnp.where(mask, u / temp, -jnp.inf)
        m = jnp.max(z, axis=1, keepdims=True)
        m = jnp.where(jnp.isfinite(m), m, 0.0)
        e = jnp.where(mask, jnp.exp(u / temp - m), 0.0)
        s = jnp.sum(e, axis=1, keepdims=True)
        probs = jnp.where(s > 0, e / jnp.where(s > 0, s, 1.0), 0.0)
        outs.append(jnp.dot(probs, hfeat, precision=hp))
    if concat_heads:
        return jnp.concatenate(outs, axis=1)
    return jnp.mean(jnp.stack(outs, 0), axis=0)


if __name__ == "__main__":
    key = jax.random.PRNGKey(0)
    k_x, k_adj, k_p, k_x2, k_adj2 = jax.random.split(key, 5)

    # Small shapes consistent with the module.
    N, c_in, c_out, n_heads = 16, 8, 32, 2
    node_feats = jax.random.normal(k_x, (N, c_in), jnp.float32)
    adj = (jax.random.uniform(k_adj, (N, N)) < 0.3).astype(jnp.float32)
    adj = jnp.maximum(adj, jnp.eye(N, dtype=jnp.float32))
    params = init_params(k_p, c_in, c_out, n_heads, concat_heads=True)

    out = jax.block_until_ready(
        gat_multi_head(node_feats, adj, params, temp=1.0, concat_heads=True))
    assert out.shape == (N, c_out)
    ref = _reference(node_feats, adj, params, temp=1.0, concat_heads=True)
    np.testing.assert_allclose(np.asarray(out), np.asarray(ref), rtol=1e-3, atol=1e-3)

    # Mean-over-heads combine path (same kernel, different combine).
    out_mean = jax.block_until_ready(
        gat_multi_head(node_feats, adj, params, temp=1.0, concat_heads=False))
    ref_mean = _reference(node_feats, adj, params, temp=1.0, concat_heads=False)
    np.testing.assert_allclose(np.asarray(out_mean), np.asarray(ref_mean),
                               rtol=1e-3, atol=1e-3)

    # Multi-tile grid path (3 row tiles of 16) to exercise the pipelined BlockSpec.
    N2 = 48
    node_feats2 = jax.random.normal(k_x2, (N2, c_in), jnp.float32)
    adj2 = (jax.random.uniform(k_adj2, (N2, N2)) < 0.2).astype(jnp.float32)
    adj2 = jnp.maximum(adj2, jnp.eye(N2, dtype=jnp.float32))
    out2 = jax.block_until_ready(
        gat_multi_head(node_feats2, adj2, params, temp=1.0, concat_heads=True, tq=16))
    ref2 = _reference(node_feats2, adj2, params, temp=1.0, concat_heads=True)
    np.testing.assert_allclose(np.asarray(out2), np.asarray(ref2), rtol=1e-3, atol=1e-3)

    print("KERNEL_OK")
</pallas_src>

<mosaic_0001>
module attributes {stable_mosaic.version = 11 : i64} {
  func.func @_gat_attn_kernel(%arg0: i32, %arg1: memref<16x16xf32, #tpu.memory_space<vmem>>, %arg2: memref<16x2xf32, #tpu.memory_space<vmem>>, %arg3: memref<2x16xf32, #tpu.memory_space<vmem>>, %arg4: memref<16x34xf32, #tpu.memory_space<vmem>>, %arg5: memref<16x32xf32, #tpu.memory_space<vmem>>) attributes {dimension_semantics = [#tpu.dimension_semantics<parallel>], iteration_bounds = array<i64: 1>, scalar_prefetch = 0 : i64, scratch_operands = 0 : i64, tpu.core_type = #tpu.core_type<tc>, window_params = [{transform_indices = @transform_0, window_bounds = array<i64: 16, 16>}, {transform_indices = @transform_1, window_bounds = array<i64: 16, 2>}, {pipeline_mode = #tpu.pipeline_mode<synchronous>, transform_indices = @transform_2, window_bounds = array<i64: 2, 16>}, {pipeline_mode = #tpu.pipeline_mode<synchronous>, transform_indices = @transform_3, window_bounds = array<i64: 16, 34>}, {transform_indices = @transform_4, window_bounds = array<i64: 16, 32>}]} {
    %c0 = arith.constant 0 : index
    %c0_0 = arith.constant 0 : index
    %0 = vector.load %arg1[%c0, %c0_0] : memref<16x16xf32, #tpu.memory_space<vmem>>, vector<16x16xf32>
    %c0_1 = arith.constant 0 : index
    %c0_2 = arith.constant 0 : index
    %1 = vector.load %arg2[%c0_1, %c0_2] : memref<16x2xf32, #tpu.memory_space<vmem>>, vector<16x2xf32>
    %c0_3 = arith.constant 0 : index
    %c0_4 = arith.constant 0 : index
    %2 = vector.load %arg3[%c0_3, %c0_4] : memref<2x16xf32, #tpu.memory_space<vmem>>, vector<2x16xf32>
    %3 = vector.extract_strided_slice %1 {offsets = [0, 0], sizes = [16, 1], strides = [1, 1]} : vector<16x2xf32> to vector<16x1xf32>
    %4 = vector.extract_strided_slice %2 {offsets = [0, 0], sizes = [1, 16], strides = [1, 1]} : vector<2x16xf32> to vector<1x16xf32>
    %5 = vector.broadcast %3 : vector<16x1xf32> to vector<16x16xf32>
    %6 = vector.broadcast %4 : vector<1x16xf32> to vector<16x16xf32>
    %7 = arith.addf %5, %6 : vector<16x16xf32>
    %8 = arith.mulf %0, %7 : vector<16x16xf32>
    %cst = arith.constant 0.000000e+00 : f32
    %9 = vector.broadcast %cst : f32 to vector<16x16xf32>
    %10 = arith.cmpf one, %8, %9 : vector<16x16xf32>
    %cst_5 = arith.constant 5.000000e-01 : f32
    %11 = vector.broadcast %cst_5 : f32 to vector<16x16xf32>
    %12 = arith.mulf %8, %11 : vector<16x16xf32>
    %13 = math.tanh %12 : vector<16x16xf32>
    %cst_6 = arith.constant 5.000000e-01 : f32
    %14 = vector.broadcast %cst_6 : f32 to vector<16x16xf32>
    %15 = arith.mulf %13, %14 : vector<16x16xf32>
    %16 = math.exp %15 : vector<16x16xf32>
    %cst_7 = arith.constant 0.000000e+00 : f32
    %17 = vector.broadcast %cst_7 : f32 to vector<16x16xf32>
    %18 = arith.select %10, %16, %17 : vector<16x16xi1>, vector<16x16xf32>
    %c0_8 = arith.constant 0 : index
    %c0_9 = arith.constant 0 : index
    %19 = vector.load %arg4[%c0_8, %c0_9] : memref<16x34xf32, #tpu.memory_space<vmem>>, vector<16x17xf32>
    %cst_10 = arith.constant dense<0.000000e+00> : vector<16x17xf32>
    %20 = tpu.matmul %18, %19, %cst_10 {dimension_numbers = #tpu.dot_dimension_numbers<[1], [0], [0], [1], [0, 0, 1, 1], [], []>} : vector<16x16xf32>, vector<16x17xf32>, vector<16x17xf32> -> vector<16x17xf32>
    %21 = vector.extract_strided_slice %20 {offsets = [0, 0], sizes = [16, 16], strides = [1, 1]} : vector<16x17xf32> to vector<16x16xf32>
    %22 = vector.extract_strided_slice %20 {offsets = [0, 16], sizes = [16, 1], strides = [1, 1]} : vector<16x17xf32> to vector<16x1xf32>
    %cst_11 = arith.constant 0.000000e+00 : f32
    %23 = vector.broadcast %cst_11 : f32 to vector<16x1xf32>
    %24 = arith.cmpf ogt, %22, %23 : vector<16x1xf32>
    %cst_12 = arith.constant 1.000000e+00 : f32
    %25 = vector.broadcast %cst_12 : f32 to vector<16x1xf32>
    %26 = arith.select %24, %22, %25 : vector<16x1xi1>, vector<16x1xf32>
    %27 = vector.broadcast %26 : vector<16x1xf32> to vector<16x16xf32>
    %28 = arith.divf %21, %27 : vector<16x16xf32>
    %cst_13 = arith.constant 0.000000e+00 : f32
    %29 = vector.shape_cast %24 : vector<16x1xi1> to vector<16x1xi1>
    %30 = vector.broadcast %29 : vector<16x1xi1> to vector<16x16xi1>
    %31 = vector.broadcast %cst_13 : f32 to vector<16x16xf32>
    %32 = arith.select %30, %28, %31 : vector<16x16xi1>, vector<16x16xf32>
    %c0_14 = arith.constant 0 : index
    %c0_15 = arith.constant 0 : index
    %33 = vector.load %arg5[%c0_14, %c0_15] : memref<16x32xf32, #tpu.memory_space<vmem>>, vector<16x16xf32>
    tpu.vector_store %arg5[%c0_14, %c0_15], %32 {strides = array<i32>} : memref<16x32xf32, #tpu.memory_space<vmem>>, vector<16x16xf32>,
    %34 = vector.extract_strided_slice %1 {offsets = [0, 1], sizes = [16, 1], strides = [1, 1]} : vector<16x2xf32> to vector<16x1xf32>
    %35 = vector.extract_strided_slice %2 {offsets = [1, 0], sizes = [1, 16], strides = [1, 1]} : vector<2x16xf32> to vector<1x16xf32>
    %36 = vector.broadcast %34 : vector<16x1xf32> to vector<16x16xf32>
    %37 = vector.broadcast %35 : vector<1x16xf32> to vector<16x16xf32>
    %38 = arith.addf %36, %37 : vector<16x16xf32>
    %39 = arith.mulf %0, %38 : vector<16x16xf32>
    %cst_16 = arith.constant 0.000000e+00 : f32
    %40 = vector.broadcast %cst_16 : f32 to vector<16x16xf32>
    %41 = arith.cmpf one, %39, %40 : vector<16x16xf32>
    %cst_17 = arith.constant 5.000000e-01 : f32
    %42 = vector.broadcast %cst_17 : f32 to vector<16x16xf32>
    %43 = arith.mulf %39, %42 : vector<16x16xf32>
    %44 = math.tanh %43 : vector<16x16xf32>
    %cst_18 = arith.constant 5.000000e-01 : f32
    %45 = vector.broadcast %cst_18 : f32 to vector<16x16xf32>
    %46 = arith.mulf %44, %45 : vector<16x16xf32>
    %47 = math.exp %46 : vector<16x16xf32>
    %cst_19 = arith.constant 0.000000e+00 : f32
    %48 = vector.broadcast %cst_19 : f32 to vector<16x16xf32>
    %49 = arith.select %41, %47, %48 : vector<16x16xi1>, vector<16x16xf32>
    %c0_20 = arith.constant 0 : index
    %c17 = arith.constant 17 : index
    %50 = vector.load %arg4[%c0_20, %c17] : memref<16x34xf32, #tpu.memory_space<vmem>>, vector<16x17xf32>
    %cst_21 = arith.constant dense<0.000000e+00> : vector<16x17xf32>
    %51 = tpu.matmul %49, %50, %cst_21 {dimension_numbers = #tpu.dot_dimension_numbers<[1], [0], [0], [1], [0, 0, 1, 1], [], []>} : vector<16x16xf32>, vector<16x17xf32>, vector<16x17xf32> -> vector<16x17xf32>
    %52 = vector.extract_strided_slice %51 {offsets = [0, 0], sizes = [16, 16], strides = [1, 1]} : vector<16x17xf32> to vector<16x16xf32>
    %53 = vector.extract_strided_slice %51 {offsets = [0, 16], sizes = [16, 1], strides = [1, 1]} : vector<16x17xf32> to vector<16x1xf32>
    %cst_22 = arith.constant 0.000000e+00 : f32
    %54 = vector.broadcast %cst_22 : f32 to vector<16x1xf32>
    %55 = arith.cmpf ogt, %53, %54 : vector<16x1xf32>
    %cst_23 = arith.constant 1.000000e+00 : f32
    %56 = vector.broadcast %cst_23 : f32 to vector<16x1xf32>
    %57 = arith.select %55, %53, %56 : vector<16x1xi1>, vector<16x1xf32>
    %58 = vector.broadcast %57 : vector<16x1xf32> to vector<16x16xf32>
    %59 = arith.divf %52, %58 : vector<16x16xf32>
    %cst_24 = arith.constant 0.000000e+00 : f32
    %60 = vector.shape_cast %55 : vector<16x1xi1> to vector<16x1xi1>
    %61 = vector.broadcast %60 : vector<16x1xi1> to vector<16x16xi1>
    %62 = vector.broadcast %cst_24 : f32 to vector<16x16xf32>
    %63 = arith.select %61, %59, %62 : vector<16x16xi1>, vector<16x16xf32>
    %c0_25 = arith.constant 0 : index
    %c16 = arith.constant 16 : index
    %64 = vector.load %arg5[%c0_25, %c16] : memref<16x32xf32, #tpu.memory_space<vmem>>, vector<16x16xf32>
    tpu.vector_store %arg5[%c0_25, %c16], %63 {strides = array<i32>} : memref<16x32xf32, #tpu.memory_space<vmem>>, vector<16x16xf32>,
    return
  }
  func.func @transform_0(%arg0: i32) -> (i32, i32) {
    %c0_i32 = arith.constant 0 : i32
    %c0_i32_0 = arith.constant 0 : i32
    return %arg0, %c0_i32 : i32, i32
  }
  func.func @transform_1(%arg0: i32) -> (i32, i32) {
    %c0_i32 = arith.constant 0 : i32
    %c0_i32_0 = arith.constant 0 : i32
    return %arg0, %c0_i32 : i32, i32
  }
  func.func @transform_2(%arg0: i32) -> (i32, i32) {
    %c0_i32 = arith.constant 0 : i32
    %c0_i32_0 = arith.constant 0 : i32
    %c0_i32_1 = arith.constant 0 : i32
    return %c0_i32, %c0_i32_0 : i32, i32
  }
  func.func @transform_3(%arg0: i32) -> (i32, i32) {
    %c0_i32 = arith.constant 0 : i32
    %c0_i32_0 = arith.constant 0 : i32
    %c0_i32_1 = arith.constant 0 : i32
    return %c0_i32, %c0_i32_0 : i32, i32
  }
  func.func @transform_4(%arg0: i32) -> (i32, i32) {
    %c0_i32 = arith.constant 0 : i32
    %c0_i32_0 = arith.constant 0 : i32
    return %arg0, %c0_i32 : i32, i32
  }
}

</mosaic_0001>

<llo_original>
// kernel: tpu_custom_call.1
$region0: #{tpu_custom_call.1}
  #allocation0 [shape = 'u32[]', space=smem, size = 0x4, offset = 0x4, fixed_abs, tag = 'smem constant byte address 0x4 - core index']
  #allocation1 [shape = 'u32[72,128]{1,0:T(1,128)}', space=vmem, size = 0x9000, scoped, tag = 'internal scratch']
  %s0 = inlined_call_operand.vmem [shape: f32[16,16], index: 0, kind: input, shape index: {}]
  %s1 = inlined_call_operand.vmem [shape: f32[16,2], index: 1, kind: input, shape index: {}]
  %s2 = inlined_call_operand.vmem [shape: f32[2,16], index: 2, kind: input, shape index: {}]
  %s3 = inlined_call_operand.hbm [shape: f32[16,34], index: 3, kind: input, shape index: {}]
  %s4 = inlined_call_operand.hbm [shape: f32[16,32], index: 4, kind: output, shape index: {}]
  %s5 = sld [smem:[#allocation0]]
  $region30: #{tpu_custom_call.1} parent=0
    _
  %s7 = ssub.s32 1, %s5
  %s8 = scalar_select 0, %s7, %s5
  $region1: #{tpu_custom_call.1} parent=0
    #allocation2 [shape = 'u8[8192]{0}', space=vmem, size = 0x2000, scoped, tag = 'input window, operand 3, single buffered']
    #allocation3 [shape = 's32[1]{0}', space=sflag, size = 0x4, scoped, tag = 'scoped memory for tpu_custom_call.1']
    #allocation4 [shape = 's32[1]{0}', space=sflag, size = 0x4, scoped, tag = 'scoped memory for tpu_custom_call.1']
    #allocation5 [shape = 'u8[8192]{0}', space=vmem, size = 0x2000, scoped, tag = 'output window, operand 0, single buffered']
    %9 = vsyncpa [#allocation3], 0
    %10 = vsyncpa [#allocation4], 0
    // Predicated region
    $region2: #{tpu_custom_call.1} parent=1 // pred_check
      _
    $region3: #{tpu_custom_call.1} parent=1 // pred_check_branch
      %12 = sbr.rel (0) target = $region5
    $region4: #{tpu_custom_call.1} parent=1 // pred_region
      _
    $region5: #{tpu_custom_call.1} parent=1 // pred_fallthru
      _
    // Predicated region
    $region6: #{tpu_custom_call.1} parent=1 // pred_check
      _
    $region7: #{tpu_custom_call.1} parent=1 // pred_check_branch
      %14 = sbr.rel (0) target = $region9
    $region8: #{tpu_custom_call.1} parent=1 // pred_region
      _
    $region9: #{tpu_custom_call.1} parent=1 // pred_fallthru
      _
    // Predicated region
    $region10: #{tpu_custom_call.1} parent=1 // pred_check
      _
    $region11: #{tpu_custom_call.1} parent=1 // pred_check_branch
      %16 = sbr.rel (0) target = $region13
    $region12: #{tpu_custom_call.1} parent=1 // pred_region
      _
    $region13: #{tpu_custom_call.1} parent=1 // pred_fallthru
      _
    // Predicated region
    $region14: #{tpu_custom_call.1} parent=1 // pred_check
      _
    $region15: #{tpu_custom_call.1} parent=1 // pred_check_branch
      %18 = sbr.rel (0) target = $region17
    $region16: #{tpu_custom_call.1} parent=1 // pred_region
      %20 = vsyncadd [#allocation3], 0
      %s21 = sshll.u32 %s3, 4
      %s22 = int_to_ptr.hbm [resolvable:$true] %s21
      %s23 = sshll.u32 [#allocation2], 4
      %s24 = int_to_ptr.vmem [resolvable:$true] %s23
      %29 = dma.hbm_to_vmem [thread:$0]  %s22, 256, %s24, [#allocation3], 128, 128, 8
    $region17: #{tpu_custom_call.1} parent=1 // pred_fallthru
      _
    // Predicated region
    $region18: #{tpu_custom_call.1} parent=1 // pred_check
      _
    $region19: #{tpu_custom_call.1} parent=1 // pred_check_branch
      %31 = sbr.rel (0) target = $region21
    $region20: #{tpu_custom_call.1} parent=1 // pred_region
      %33 = dma.done [#allocation3], 256
    $region21: #{tpu_custom_call.1} parent=1 // pred_fallthru
      _
    %v34 = vld [vmem:[%s0] sm:$0xff]
    %v35 = vld [vmem:[%s0 + $0x8] sm:$0xff]
    %v36 = vld [vmem:[%s1] sm:$0xff]
    %v37 = vld [vmem:[%s1 + $0x8] sm:$0xff]
    %v38 = vld [vmem:[%s2] sm:$0x3]
    %40 = vset.pattern.permute.xlu0 0
    %41 = vperm.xlu0 %40, %v36
    %v42 = vpop.permute.xlu0 %41
    %45 = vset.pattern.permute.xlu0 0
    %46 = vperm.xlu0 %45, %v37
    %v47 = vpop.permute.xlu0 %46
    %v49 = vperm.slane %v38, 0
    %v50 = vadd.f32 %v42, %v49
    %v51 = vadd.f32 %v47, %v49
    %v52 = vmul.f32 %v34, %v50
    %v53 = vmul.f32 %v35, %v51
    %vm54 = vcmp.ne.f32.partialorder %v52, 0.0
    %vm55 = vcmp.ne.f32.partialorder %v53, 0.0
    %v56 = vmul.f32 %v52, 0.5
    %v57 = vmul.f32 %v53, 0.5
    %v58 = vtanh.pop %v56
    %v59 = vtanh.pop %v57
    %v60 = vmul.f32 %v58, 0.5
    %v61 = vmul.f32 %v59, 0.5
    %v62 = vmul.f32 %v60, 1.442695
    %v63 = vpow.pop %v62
    %v64 = vmul.f32 %v61, 1.442695
    %v65 = vpow.pop %v64
    %v66 = vsel %vm54, %v63, 0.0
    %v67 = vsel %vm55, %v65, 0.0
    %v68 = vld [vmem:[#allocation2] sm:$0xff]
    %v69 = vld [vmem:[#allocation2 + $0x8] sm:$0xff]
    %vm70 = vcmask 130048
    %v72 = vsel %vm70, %v66, 0
    %v75 = vsel %vm70, %v67, 0
    %77 = vmatpush.msra.mxu0 0.0
    %78 = vmatpush.msra.mxu0 0.0
    %79 = vmatpush.msra.mxu0 0.0
    %80 = vmatpush.msra.mxu0 0.0
    %81 = vmatpush.msra.mxu0 0.0
    %82 = vmatpush.msra.mxu0 0.0
    %83 = vmatpush.msra.mxu0 0.0
    %84 = vmatpush.msra.mxu0 0.0
    %85 = vmatpush.msra.mxu0 0.0
    %86 = vmatpush.msra.mxu0 0.0
    %87 = vmatpush.msra.mxu0 0.0
    %88 = vmatpush.msra.mxu0 0.0
    %89 = vmatpush.msra.mxu0 0.0
    %90 = vmatpush.msra.mxu0 0.0
    %91 = vmatpush.msra.mxu0 %v69
    %92 = vmatpush.msra.mxu0 %v68
    %93 = vmatmul.f32.gmra.mxu0 %v72
    %v94 = vpop.f32.mrf.mxu0
    %v95 = vadd.f32 0.0, %v94
    %96 = vmatmul.f32.gmra.mxu0 %v75
    %v97 = vpop.f32.mrf.mxu0
    %v98 = vadd.f32 0.0, %v97
    %99 = vdwg.mxu0
    %vm100 = vcmp.gt.f32.partialorder %v95, 0.0
    %vm101 = vcmp.gt.f32.partialorder %v98, 0.0
    %v102 = vsel %vm100, %v95, 1.0
    %v103 = vsel %vm101, %v98, 1.0
    %105 = vset.pattern.permute.xlu0 16
    %106 = vperm.xlu0 %105, %v102
    %v107 = vpop.permute.xlu0 %106
    %110 = vset.pattern.permute.xlu0 16
    %111 = vperm.xlu0 %110, %v103
    %v112 = vpop.permute.xlu0 %111
    %v114 = vrcp.pop %v107
    %v115 = vmul.f32 %v107, %v114
    %v116 = vsub.f32 1.0, %v115
    %v117 = vmul.f32 %v114, %v116
    %v118 = vadd.f32 %v114, %v117
    %vm119 = vweird.f32 %v107
    %vm120 = vweird.f32 %v114
    %vm121 = vmor %vm119, %vm120
    %v122 = vsel %vm121, %v114, %v118
    %v123 = vand.u32 2147483647, %v107
    %vm124 = vcmp.eq.f32.partialorder %v123, 8.507059e+37
    %v125 = vand.u32 %v107, 2147483648
    %v126 = vor.u32 1.1754944e-38, %v125
    %v127 = vsel %vm124, %v126, %v122
    %v128 = vmul.f32 %v95, %v127
    %v129 = vrcp.pop %v112
    %v130 = vmul.f32 %v112, %v129
    %v131 = vsub.f32 1.0, %v130
    %v132 = vmul.f32 %v129, %v131
    %v133 = vadd.f32 %v129, %v132
    %vm134 = vweird.f32 %v112
    %vm135 = vweird.f32 %v129
    %vm136 = vmor %vm134, %vm135
    %v137 = vsel %vm136, %v129, %v133
    %v138 = vand.u32 2147483647, %v112
    %vm139 = vcmp.eq.f32.partialorder %v138, 8.507059e+37
    %v140 = vand.u32 %v112, 2147483648
    %v141 = vor.u32 1.1754944e-38, %v140
    %v142 = vsel %vm139, %v141, %v137
    %v143 = vmul.f32 %v98, %v142
    %v144 = vsel %vm100, 1, 0
    %v145 = vsel %vm101, 1, 0
    %146 = vset.pattern.permute.xlu0 16
    %147 = vperm.xlu0 %146, %v144
    %v148 = vpop.permute.xlu0 %147
    %149 = vset.pattern.permute.xlu0 16
    %150 = vperm.xlu0 %149, %v145
    %v151 = vpop.permute.xlu0 %150
    %vm152 = vcmp.eq.s32.totalorder %v148, 1
    %vm153 = vcmp.eq.s32.totalorder %v151, 1
    %v154 = vsel %vm152, %v128, 0.0
    %v155 = vsel %vm153, %v143, 0.0
    %156 = vst.msk [vmem:[#allocation5] sm:$0xff] %vm70, %v154
    %157 = vst.msk [vmem:[#allocation5 + $0x8] sm:$0xff] %vm70, %v155
    %158 = vset.pattern.permute.xlu0 1
    %159 = vperm.xlu0 %158, %v36
    %v160 = vpop.permute.xlu0 %159
    %162 = vset.pattern.permute.xlu0 1
    %163 = vperm.xlu0 %162, %v37
    %v164 = vpop.permute.xlu0 %163
    %v166 = vperm.slane %v38, 1
    %v167 = vadd.f32 %v160, %v166
    %v168 = vadd.f32 %v164, %v166
    %v169 = vmul.f32 %v34, %v167
    %v170 = vmul.f32 %v35, %v168
    %vm171 = vcmp.ne.f32.partialorder %v169, 0.0
    %vm172 = vcmp.ne.f32.partialorder %v170, 0.0
    %v173 = vmul.f32 %v169, 0.5
    %v174 = vmul.f32 %v170, 0.5
    %v175 = vtanh.pop %v173
    %v176 = vtanh.pop %v174
    %v177 = vmul.f32 %v175, 0.5
    %v178 = vmul.f32 %v176, 0.5
    %v179 = vmul.f32 %v177, 1.442695
    %v180 = vpow.pop %v179
    %v181 = vmul.f32 %v178, 1.442695
    %v182 = vpow.pop %v181
    %v183 = vsel %vm171, %v180, 0.0
    %v184 = vsel %vm172, %v182, 0.0
    %v185 = vld [vmem:[#allocation2] sm:$0xff]
    %v186 = vld [vmem:[#allocation2 + $0x8] sm:$0xff]
    %189 = vrot.lane.b32.xlu0 %v185, 111
    %v190 = vpop.permute.xlu0 %189
    %191 = vrot.lane.b32.xlu0 %v186, 111
    %v192 = vpop.permute.xlu0 %191
    %v196 = vsel %vm70, %v183, 0
    %v199 = vsel %vm70, %v184, 0
    %201 = vmatpush.msra.mxu0 0.0
    %202 = vmatpush.msra.mxu0 0.0
    %203 = vmatpush.msra.mxu0 0.0
    %204 = vmatpush.msra.mxu0 0.0
    %205 = vmatpush.msra.mxu0 0.0
    %206 = vmatpush.msra.mxu0 0.0
    %207 = vmatpush.msra.mxu0 0.0
    %208 = vmatpush.msra.mxu0 0.0
    %209 = vmatpush.msra.mxu0 0.0
    %210 = vmatpush.msra.mxu0 0.0
    %211 = vmatpush.msra.mxu0 0.0
    %212 = vmatpush.msra.mxu0 0.0
    %213 = vmatpush.msra.mxu0 0.0
    %214 = vmatpush.msra.mxu0 0.0
    %215 = vmatpush.msra.mxu0 %v192
    %216 = vmatpush.msra.mxu0 %v190
    %217 = vmatmul.f32.gmra.mxu0 %v196
    %v218 = vpop.f32.mrf.mxu0
    %v219 = vadd.f32 0.0, %v218
    %220 = vmatmul.f32.gmra.mxu0 %v199
    %v221 = vpop.f32.mrf.mxu0
    %v222 = vadd.f32 0.0, %v221
    %223 = vdwg.mxu0
    %vm224 = vcmp.gt.f32.partialorder %v219, 0.0
    %vm225 = vcmp.gt.f32.partialorder %v222, 0.0
    %v226 = vsel %vm224, %v219, 1.0
    %v227 = vsel %vm225, %v222, 1.0
    %229 = vset.pattern.permute.xlu0 16
    %230 = vperm.xlu0 %229, %v226
    %v231 = vpop.permute.xlu0 %230
    %234 = vset.pattern.permute.xlu0 16
    %235 = vperm.xlu0 %234, %v227
    %v236 = vpop.permute.xlu0 %235
    %v238 = vrcp.pop %v231
    %v239 = vmul.f32 %v231, %v238
    %v240 = vsub.f32 1.0, %v239
    %v241 = vmul.f32 %v238, %v240
    %v242 = vadd.f32 %v238, %v241
    %vm243 = vweird.f32 %v231
    %vm244 = vweird.f32 %v238
    %vm245 = vmor %vm243, %vm244
    %v246 = vsel %vm245, %v238, %v242
    %v247 = vand.u32 2147483647, %v231
    %vm248 = vcmp.eq.f32.partialorder %v247, 8.507059e+37
    %v249 = vand.u32 %v231, 2147483648
    %v250 = vor.u32 1.1754944e-38, %v249
    %v251 = vsel %vm248, %v250, %v246
    %v252 = vmul.f32 %v219, %v251
    %v253 = vrcp.pop %v236
    %v254 = vmul.f32 %v236, %v253
    %v255 = vsub.f32 1.0, %v254
    %v256 = vmul.f32 %v253, %v255
    %v257 = vadd.f32 %v253, %v256
    %vm258 = vweird.f32 %v236
    %vm259 = vweird.f32 %v253
    %vm260 = vmor %vm258, %vm259
    %v261 = vsel %vm260, %v253, %v257
    %v262 = vand.u32 2147483647, %v236
    %vm263 = vcmp.eq.f32.partialorder %v262, 8.507059e+37
    %v264 = vand.u32 %v236, 2147483648
    %v265 = vor.u32 1.1754944e-38, %v264
    %v266 = vsel %vm263, %v265, %v261
    %v267 = vmul.f32 %v222, %v266
    %v268 = vsel %vm224, 1, 0
    %v269 = vsel %vm225, 1, 0
    %270 = vset.pattern.permute.xlu0 16
    %271 = vperm.xlu0 %270, %v268
    %v272 = vpop.permute.xlu0 %271
    %273 = vset.pattern.permute.xlu0 16
    %274 = vperm.xlu0 %273, %v269
    %v275 = vpop.permute.xlu0 %274
    %vm276 = vcmp.eq.s32.totalorder %v272, 1
    %vm277 = vcmp.eq.s32.totalorder %v275, 1
    %v278 = vsel %vm276, %v252, 0.0
    %v279 = vsel %vm277, %v267, 0.0
    %282 = vrot.lane.b32.xlu0 %v278, 16
    %v283 = vpop.permute.xlu0 %282
    %284 = vrot.lane.b32.xlu0 %v279, 16
    %v285 = vpop.permute.xlu0 %284
    %vm288 = vcmask 261248
    %289 = vst.msk [vmem:[#allocation5] sm:$0xff] %vm288, %v283
    %290 = vst.msk [vmem:[#allocation5 + $0x8] sm:$0xff] %vm288, %v285
    // Predicated region
    $region22: #{tpu_custom_call.1} parent=1 // pred_check
      _
    $region23: #{tpu_custom_call.1} parent=1 // pred_check_branch
      %292 = sbr.rel (0) target = $region25
    $region24: #{tpu_custom_call.1} parent=1 // pred_region
      %294 = vsyncadd [#allocation4], 0
      %s295 = sshll.u32 [#allocation5], 4
      %s296 = int_to_ptr.vmem [resolvable:$true] %s295
      %s297 = sshll.u32 %s4, 4
      %s298 = int_to_ptr.hbm [resolvable:$true] %s297
      %303 = dma.vmem_to_hbm [thread:$0]  %s296, 256, %s298, [#allocation4], 128, 128, 8
    $region25: #{tpu_custom_call.1} parent=1 // pred_fallthru
      _
    // Predicated region
    $region26: #{tpu_custom_call.1} parent=1 // pred_check
      _
    $region27: #{tpu_custom_call.1} parent=1 // pred_check_branch
      %305 = sbr.rel (0) target = $region29
    $region28: #{tpu_custom_call.1} parent=1 // pred_region
      %307 = dma.done [#allocation4], 256
    $region29: #{tpu_custom_call.1} parent=1 // pred_fallthru
      _
    %308 = vsyncpa [#allocation3], 1
    %309 = vsyncpa [#allocation4], 1

</llo_original>
